<compile_context>
chip_gen: v6e
topology: v6e:2x2x1
jax: 0.10.0
libtpu: 0.0.40
codegen_flags: <defaults>
</compile_context>

<pallas_src>
import jax
import jax.numpy as jnp
from jax.experimental import pallas as pl
from jax.experimental.pallas import tpu as pltpu

# PyTorch Linear layers (in, out), in forward order.
LAYER_DIMS = [(92, 60), (60, 40), (40, 30),   # encoder
              (30, 40), (40, 60), (60, 92)]   # decoder

F_IN = 92          # 1 * 4 * 23
F_PAD = 128        # hidden feature dims padded to one full vreg lane width
TM_MAX = 1024      # max batch-tile rows per grid step
SMALL_B = 512      # at/below this, a single block is fine (overhead small)


def _cdiv(a, b):
    return -(-a // b)


def _round_up(n, m):
    return _cdiv(n, m) * m


def autoencoder_kernel(x_ref,
                       w1, b1, w2, b2, w34, b34, w5, b5, w6, b6,
                       o_ref, xpad_ref):
    """Fused encoder+decoder MLP on one (tm, 92) batch tile.

    Matmuls: bf16 x bf16 -> f32 on the MXU; bias add / ReLU in f32; the
    40->30->40 pair of the original network is pre-fused into one matmul.
    """
    # Stage the f32 input tile into a lane-dense (tm, 128) bf16 scratch.
    # Pad lanes are re-zeroed every grid step (cheap VMEM store; stays
    # correct when the grid is sharded across TensorCores).
    xpad_ref[...] = jnp.zeros_like(xpad_ref)
    xpad_ref[:, :F_IN] = x_ref[...].astype(jnp.bfloat16)
    h = xpad_ref[...]

    def layer(h_bf16, w_ref, b_ref):
        acc = jnp.dot(h_bf16, w_ref[...],
                      preferred_element_type=jnp.float32) + b_ref[...]
        return jnp.maximum(acc, 0.0).astype(jnp.bfloat16)

    h = layer(h, w1, b1)       # 92 -> 60  + ReLU   (padded 128x128)
    h = layer(h, w2, b2)       # 60 -> 40  + ReLU
    h = layer(h, w34, b34)     # fused 40 -> 30 -> 40 (no act between) + ReLU
    h = layer(h, w5, b5)       # 40 -> 60  + ReLU
    z = jnp.dot(h, w6[...], preferred_element_type=jnp.float32) + b6[...]  # 60 -> 92
    z = z[:, :F_IN]
    # Exact sigmoid: exp on the EUP; exact divide avoids approx-reciprocal
    # overshoot above 1.0.  Output stored as bf16 (92 lanes).
    o_ref[...] = (1.0 / (1.0 + jnp.exp(-z))).astype(jnp.bfloat16)


def init_params(key):
    """PyTorch-Linear-style init: U(-1/sqrt(fan_in), 1/sqrt(fan_in)).

    Weights stored as (in, out) so the forward is y = x @ W + b."""
    params = []
    for (fan_in, fan_out) in LAYER_DIMS:
        key, kw, kb = jax.random.split(key, 3)
        bound = 1.0 / float(fan_in) ** 0.5
        w = jax.random.uniform(kw, (fan_in, fan_out), jnp.float32, -bound, bound)
        b = jax.random.uniform(kb, (fan_out,), jnp.float32, -bound, bound)
        params.append((w, b))
    return params


def _pad2(w, rows, cols):
    return jnp.pad(w, ((0, rows - w.shape[0]), (0, cols - w.shape[1])))


def pack_params(params):
    """Fuse the back-to-back unactivated linears (40->30 then 30->40 — the
    PyTorch module has no activation between them), zero-pad every feature
    dim to 128, and cast weights to bf16 for the MXU (biases stay f32)."""
    (w1, b1), (w2, b2), (w3, b3), (w4, b4), (w5, b5), (w6, b6) = params
    w34 = w3 @ w4                 # (40, 40), exact (no activation in between)
    b34 = b3 @ w4 + b4            # (40,)
    packed = []
    for w, b in [(w1, b1), (w2, b2), (w34, b34), (w5, b5), (w6, b6)]:
        wp = _pad2(w, F_PAD, F_PAD).astype(jnp.bfloat16)
        bp = jnp.pad(b, (0, F_PAD - b.shape[0])).reshape(1, F_PAD).astype(jnp.float32)
        packed += [wp, bp]
    return packed


@jax.jit
def autoencoder_forward(x_nchw, packed_params):
    """x: (B, 1, 4, 23) f32 -> (B, 1, 4, 23) f32 (same as the PyTorch forward)."""
    B = x_nchw.shape[0]
    x2d = x_nchw.reshape(B, F_IN).astype(jnp.float32)

    # Batch tiling: single block for small batches; otherwise >= 2 blocks
    # (v7x megacore) of at most TM_MAX rows, tile rounded to 16 (bf16 pack).
    b16 = _round_up(max(B, 1), 16)
    if b16 <= SMALL_B:
        n_blocks = 1
    else:
        n_blocks = max(2, _cdiv(b16, TM_MAX))
    tm = _round_up(_cdiv(b16, n_blocks), 16)
    padded_b = n_blocks * tm

    # Only the batch dim is padded (feature pad + bf16 cast happen in-kernel,
    # hidden under the BlockSpec pipeline).  Padded rows are sliced off below.
    x_p = x2d if padded_b == B else jnp.pad(x2d, ((0, padded_b - B), (0, 0)))

    x_spec = pl.BlockSpec((tm, F_IN), lambda i: (i, 0))
    o_spec = pl.BlockSpec((tm, F_IN), lambda i: (i, 0))
    w_spec = pl.BlockSpec((F_PAD, F_PAD), lambda i: (0, 0))   # VMEM-resident
    b_spec = pl.BlockSpec((1, F_PAD), lambda i: (0, 0))
    param_specs = [w_spec, b_spec] * 5

    # Advisory cost estimate (padded shapes; 5 fused layers).
    cost = pl.CostEstimate(
        flops=2 * padded_b * 5 * F_PAD * F_PAD,
        transcendentals=padded_b * F_IN,
        bytes_accessed=(padded_b * F_IN * 4          # f32 input
                        + padded_b * F_IN * 2        # bf16 output
                        + 5 * (F_PAD * F_PAD * 2 + F_PAD * 4)))

    # VMEM budget from actual tile sizes + headroom; well under every
    # generation's scoped limit even at tm = 1024.
    weight_bytes = 5 * (F_PAD * F_PAD * 2 + F_PAD * 4)
    vmem_bytes = int(min(
        32 * 1024 * 1024,
        2 * weight_bytes                 # double-buffered weights/biases
        + 2 * tm * F_IN * 4              # double-buffered f32 input tiles
        + 2 * tm * F_IN * 2              # double-buffered bf16 output tiles
        + tm * F_PAD * 2                 # xpad staging scratch
        + 4 * tm * F_PAD * 4             # live f32/bf16 intermediates
        + (8 << 20)))                    # headroom

    out = pl.pallas_call(
        autoencoder_kernel,
        out_shape=jax.ShapeDtypeStruct((padded_b, F_IN), jnp.bfloat16),
        grid=(n_blocks,),
        in_specs=[x_spec] + param_specs,
        out_specs=o_spec,
        scratch_shapes=[pltpu.VMEM((tm, F_PAD), jnp.bfloat16)],
        compiler_params=pltpu.CompilerParams(
            dimension_semantics=("parallel",),
            vmem_limit_bytes=vmem_bytes),
        cost_estimate=cost,
    )(x_p, *packed_params)

    # Single fused epilogue pass: contiguous batch slice + bf16->f32 cast
    # + reshape (no strided 128->92 lane slice).
    return out[:B].astype(jnp.float32).reshape(B, 1, 4, 23)


def reference_forward(x_nchw, params):
    """Pure-JAX f32 reference of the original PyTorch forward (unfused)."""
    B = x_nchw.shape[0]
    h = x_nchw.reshape(B, F_IN)
    (w1, b1), (w2, b2), (w3, b3), (w4, b4), (w5, b5), (w6, b6) = params
    h = jax.nn.relu(h @ w1 + b1)
    h = jax.nn.relu(h @ w2 + b2)
    h = h @ w3 + b3                      # no activation after the bottleneck
    h = jax.nn.relu(h @ w4 + b4)
    h = jax.nn.relu(h @ w5 + b5)
    h = jax.nn.sigmoid(h @ w6 + b6)
    return h.reshape(B, 1, 4, 23)


if __name__ == "__main__":
    key = jax.random.PRNGKey(0)
    key, kx1, kx2 = jax.random.split(key, 3)

    params = init_params(key)
    packed = pack_params(params)

    # Small batch (single-block grid).
    B1 = 8
    x1 = jax.random.normal(kx1, (B1, 1, 4, 23), jnp.float32)
    y1 = jax.block_until_ready(autoencoder_forward(x1, packed))
    assert y1.shape == (B1, 1, 4, 23), y1.shape
    assert y1.dtype == jnp.float32
    assert bool(jnp.all((y1 >= 0.0) & (y1 <= 1.0)))     # sigmoid output range
    y1_ref = reference_forward(x1, params)
    err1 = float(jnp.max(jnp.abs(y1 - y1_ref)))
    assert err1 < 5e-2, err1

    # Larger batch: exercises multi-block grid + batch padding path.
    B2 = 600
    x2 = jax.random.normal(kx2, (B2, 1, 4, 23), jnp.float32)
    y2 = jax.block_until_ready(autoencoder_forward(x2, packed))
    assert y2.shape == (B2, 1, 4, 23), y2.shape
    assert bool(jnp.all((y2 >= 0.0) & (y2 <= 1.0)))
    y2_ref = reference_forward(x2, params)
    err2 = float(jnp.max(jnp.abs(y2 - y2_ref)))
    assert err2 < 5e-2, err2

    print("KERNEL_OK")
</pallas_src>

<mosaic_0001>
module attributes {stable_mosaic.version = 11 : i64} {
  func.func @autoencoder_kernel(%arg0: i32, %arg1: memref<16x92xf32, #tpu.memory_space<vmem>>, %arg2: memref<128x128xbf16, #tpu.memory_space<vmem>>, %arg3: memref<1x128xf32, #tpu.memory_space<vmem>>, %arg4: memref<128x128xbf16, #tpu.memory_space<vmem>>, %arg5: memref<1x128xf32, #tpu.memory_space<vmem>>, %arg6: memref<128x128xbf16, #tpu.memory_space<vmem>>, %arg7: memref<1x128xf32, #tpu.memory_space<vmem>>, %arg8: memref<128x128xbf16, #tpu.memory_space<vmem>>, %arg9: memref<1x128xf32, #tpu.memory_space<vmem>>, %arg10: memref<128x128xbf16, #tpu.memory_space<vmem>>, %arg11: memref<1x128xf32, #tpu.memory_space<vmem>>, %arg12: memref<16x92xbf16, #tpu.memory_space<vmem>>, %arg13: memref<16x128xbf16, #tpu.memory_space<vmem>>) attributes {dimension_semantics = [#tpu.dimension_semantics<parallel>], iteration_bounds = array<i64: 1>, scalar_prefetch = 0 : i64, scratch_operands = 1 : i64, tpu.core_type = #tpu.core_type<tc>, window_params = [{transform_indices = @transform_0, window_bounds = array<i64: 16, 92>}, {pipeline_mode = #tpu.pipeline_mode<synchronous>, transform_indices = @transform_1, window_bounds = array<i64: 128, 128>}, {pipeline_mode = #tpu.pipeline_mode<synchronous>, transform_indices = @transform_2, window_bounds = array<i64: 1, 128>}, {pipeline_mode = #tpu.pipeline_mode<synchronous>, transform_indices = @transform_3, window_bounds = array<i64: 128, 128>}, {pipeline_mode = #tpu.pipeline_mode<synchronous>, transform_indices = @transform_4, window_bounds = array<i64: 1, 128>}, {pipeline_mode = #tpu.pipeline_mode<synchronous>, transform_indices = @transform_5, window_bounds = array<i64: 128, 128>}, {pipeline_mode = #tpu.pipeline_mode<synchronous>, transform_indices = @transform_6, window_bounds = array<i64: 1, 128>}, {pipeline_mode = #tpu.pipeline_mode<synchronous>, transform_indices = @transform_7, window_bounds = array<i64: 128, 128>}, {pipeline_mode = #tpu.pipeline_mode<synchronous>, transform_indices = @transform_8, window_bounds = array<i64: 1, 128>}, {pipeline_mode = #tpu.pipeline_mode<synchronous>, transform_indices = @transform_9, window_bounds = array<i64: 128, 128>}, {pipeline_mode = #tpu.pipeline_mode<synchronous>, transform_indices = @transform_10, window_bounds = array<i64: 1, 128>}, {transform_indices = @transform_11, window_bounds = array<i64: 16, 92>}]} {
    %cst = arith.constant 0.000000e+00 : bf16
    %0 = vector.broadcast %cst : bf16 to vector<16x128xbf16>
    %c0 = arith.constant 0 : index
    %c0_0 = arith.constant 0 : index
    %1 = vector.load %arg13[%c0, %c0_0] : memref<16x128xbf16, #tpu.memory_space<vmem>>, vector<16x128xbf16>
    tpu.vector_store %arg13[%c0, %c0_0], %0 {strides = array<i32>} : memref<16x128xbf16, #tpu.memory_space<vmem>>, vector<16x128xbf16>,
    %c0_1 = arith.constant 0 : index
    %c0_2 = arith.constant 0 : index
    %2 = vector.load %arg1[%c0_1, %c0_2] : memref<16x92xf32, #tpu.memory_space<vmem>>, vector<16x92xf32>
    %3 = arith.truncf %2 : vector<16x92xf32> to vector<16x92xbf16>
    %c0_3 = arith.constant 0 : index
    %c0_4 = arith.constant 0 : index
    %4 = vector.load %arg13[%c0_3, %c0_4] : memref<16x128xbf16, #tpu.memory_space<vmem>>, vector<16x92xbf16>
    tpu.vector_store %arg13[%c0_3, %c0_4], %3 {strides = array<i32>} : memref<16x128xbf16, #tpu.memory_space<vmem>>, vector<16x92xbf16>,
    %c0_5 = arith.constant 0 : index
    %c0_6 = arith.constant 0 : index
    %5 = vector.load %arg13[%c0_5, %c0_6] : memref<16x128xbf16, #tpu.memory_space<vmem>>, vector<16x128xbf16>
    %c0_7 = arith.constant 0 : index
    %c0_8 = arith.constant 0 : index
    %6 = vector.load %arg2[%c0_7, %c0_8] : memref<128x128xbf16, #tpu.memory_space<vmem>>, vector<128x128xbf16>
    %cst_9 = arith.constant dense<0.000000e+00> : vector<16x128xf32>
    %7 = tpu.matmul %5, %6, %cst_9 {dimension_numbers = #tpu.dot_dimension_numbers<[1], [0], [0], [1], [0, 0, 1, 1], [], []>} : vector<16x128xbf16>, vector<128x128xbf16>, vector<16x128xf32> -> vector<16x128xf32>
    %c0_10 = arith.constant 0 : index
    %c0_11 = arith.constant 0 : index
    %8 = vector.load %arg3[%c0_10, %c0_11] : memref<1x128xf32, #tpu.memory_space<vmem>>, vector<1x128xf32>
    %9 = vector.broadcast %8 : vector<1x128xf32> to vector<16x128xf32>
    %10 = arith.addf %7, %9 : vector<16x128xf32>
    %cst_12 = arith.constant 0.000000e+00 : f32
    %11 = vector.broadcast %cst_12 : f32 to vector<16x128xf32>
    %12 = arith.maximumf %10, %11 : vector<16x128xf32>
    %13 = arith.truncf %12 : vector<16x128xf32> to vector<16x128xbf16>
    %c0_13 = arith.constant 0 : index
    %c0_14 = arith.constant 0 : index
    %14 = vector.load %arg4[%c0_13, %c0_14] : memref<128x128xbf16, #tpu.memory_space<vmem>>, vector<128x128xbf16>
    %cst_15 = arith.constant dense<0.000000e+00> : vector<16x128xf32>
    %15 = tpu.matmul %13, %14, %cst_15 {dimension_numbers = #tpu.dot_dimension_numbers<[1], [0], [0], [1], [0, 0, 1, 1], [], []>} : vector<16x128xbf16>, vector<128x128xbf16>, vector<16x128xf32> -> vector<16x128xf32>
    %c0_16 = arith.constant 0 : index
    %c0_17 = arith.constant 0 : index
    %16 = vector.load %arg5[%c0_16, %c0_17] : memref<1x128xf32, #tpu.memory_space<vmem>>, vector<1x128xf32>
    %17 = vector.broadcast %16 : vector<1x128xf32> to vector<16x128xf32>
    %18 = arith.addf %15, %17 : vector<16x128xf32>
    %cst_18 = arith.constant 0.000000e+00 : f32
    %19 = vector.broadcast %cst_18 : f32 to vector<16x128xf32>
    %20 = arith.maximumf %18, %19 : vector<16x128xf32>
    %21 = arith.truncf %20 : vector<16x128xf32> to vector<16x128xbf16>
    %c0_19 = arith.constant 0 : index
    %c0_20 = arith.constant 0 : index
    %22 = vector.load %arg6[%c0_19, %c0_20] : memref<128x128xbf16, #tpu.memory_space<vmem>>, vector<128x128xbf16>
    %cst_21 = arith.constant dense<0.000000e+00> : vector<16x128xf32>
    %23 = tpu.matmul %21, %22, %cst_21 {dimension_numbers = #tpu.dot_dimension_numbers<[1], [0], [0], [1], [0, 0, 1, 1], [], []>} : vector<16x128xbf16>, vector<128x128xbf16>, vector<16x128xf32> -> vector<16x128xf32>
    %c0_22 = arith.constant 0 : index
    %c0_23 = arith.constant 0 : index
    %24 = vector.load %arg7[%c0_22, %c0_23] : memref<1x128xf32, #tpu.memory_space<vmem>>, vector<1x128xf32>
    %25 = vector.broadcast %24 : vector<1x128xf32> to vector<16x128xf32>
    %26 = arith.addf %23, %25 : vector<16x128xf32>
    %cst_24 = arith.constant 0.000000e+00 : f32
    %27 = vector.broadcast %cst_24 : f32 to vector<16x128xf32>
    %28 = arith.maximumf %26, %27 : vector<16x128xf32>
    %29 = arith.truncf %28 : vector<16x128xf32> to vector<16x128xbf16>
    %c0_25 = arith.constant 0 : index
    %c0_26 = arith.constant 0 : index
    %30 = vector.load %arg8[%c0_25, %c0_26] : memref<128x128xbf16, #tpu.memory_space<vmem>>, vector<128x128xbf16>
    %cst_27 = arith.constant dense<0.000000e+00> : vector<16x128xf32>
    %31 = tpu.matmul %29, %30, %cst_27 {dimension_numbers = #tpu.dot_dimension_numbers<[1], [0], [0], [1], [0, 0, 1, 1], [], []>} : vector<16x128xbf16>, vector<128x128xbf16>, vector<16x128xf32> -> vector<16x128xf32>
    %c0_28 = arith.constant 0 : index
    %c0_29 = arith.constant 0 : index
    %32 = vector.load %arg9[%c0_28, %c0_29] : memref<1x128xf32, #tpu.memory_space<vmem>>, vector<1x128xf32>
    %33 = vector.broadcast %32 : vector<1x128xf32> to vector<16x128xf32>
    %34 = arith.addf %31, %33 : vector<16x128xf32>
    %cst_30 = arith.constant 0.000000e+00 : f32
    %35 = vector.broadcast %cst_30 : f32 to vector<16x128xf32>
    %36 = arith.maximumf %34, %35 : vector<16x128xf32>
    %37 = arith.truncf %36 : vector<16x128xf32> to vector<16x128xbf16>
    %c0_31 = arith.constant 0 : index
    %c0_32 = arith.constant 0 : index
    %38 = vector.load %arg10[%c0_31, %c0_32] : memref<128x128xbf16, #tpu.memory_space<vmem>>, vector<128x128xbf16>
    %cst_33 = arith.constant dense<0.000000e+00> : vector<16x128xf32>
    %39 = tpu.matmul %37, %38, %cst_33 {dimension_numbers = #tpu.dot_dimension_numbers<[1], [0], [0], [1], [0, 0, 1, 1], [], []>} : vector<16x128xbf16>, vector<128x128xbf16>, vector<16x128xf32> -> vector<16x128xf32>
    %c0_34 = arith.constant 0 : index
    %c0_35 = arith.constant 0 : index
    %40 = vector.load %arg11[%c0_34, %c0_35] : memref<1x128xf32, #tpu.memory_space<vmem>>, vector<1x128xf32>
    %41 = vector.broadcast %40 : vector<1x128xf32> to vector<16x128xf32>
    %42 = arith.addf %39, %41 : vector<16x128xf32>
    %43 = vector.extract_strided_slice %42 {offsets = [0, 0], sizes = [16, 92], strides = [1, 1]} : vector<16x128xf32> to vector<16x92xf32>
    %cst_36 = arith.constant 0.000000e+00 : f32
    %44 = vector.broadcast %cst_36 : f32 to vector<16x92xf32>
    %45 = arith.subf %44, %43 : vector<16x92xf32>
    %46 = math.exp %45 : vector<16x92xf32>
    %cst_37 = arith.constant 1.000000e+00 : f32
    %47 = vector.broadcast %cst_37 : f32 to vector<16x92xf32>
    %48 = arith.addf %47, %46 : vector<16x92xf32>
    %cst_38 = arith.constant 1.000000e+00 : f32
    %49 = vector.broadcast %cst_38 : f32 to vector<16x92xf32>
    %50 = arith.divf %49, %48 : vector<16x92xf32>
    %51 = arith.truncf %50 : vector<16x92xf32> to vector<16x92xbf16>
    %c0_39 = arith.constant 0 : index
    %c0_40 = arith.constant 0 : index
    %52 = vector.load %arg12[%c0_39, %c0_40] : memref<16x92xbf16, #tpu.memory_space<vmem>>, vector<16x92xbf16>
    tpu.vector_store %arg12[%c0_39, %c0_40], %51 {strides = array<i32>} : memref<16x92xbf16, #tpu.memory_space<vmem>>, vector<16x92xbf16>,
    return
  }
  func.func @transform_0(%arg0: i32) -> (i32, i32) {
    %c0_i32 = arith.constant 0 : i32
    %c0_i32_0 = arith.constant 0 : i32
    return %arg0, %c0_i32 : i32, i32
  }
  func.func @transform_1(%arg0: i32) -> (i32, i32) {
    %c0_i32 = arith.constant 0 : i32
    %c0_i32_0 = arith.constant 0 : i32
    %c0_i32_1 = arith.constant 0 : i32
    return %c0_i32, %c0_i32_0 : i32, i32
  }
  func.func @transform_2(%arg0: i32) -> (i32, i32) {
    %c0_i32 = arith.constant 0 : i32
    %c0_i32_0 = arith.constant 0 : i32
    %c0_i32_1 = arith.constant 0 : i32
    return %c0_i32, %c0_i32_0 : i32, i32
  }
  func.func @transform_3(%arg0: i32) -> (i32, i32) {
    %c0_i32 = arith.constant 0 : i32
    %c0_i32_0 = arith.constant 0 : i32
    %c0_i32_1 = arith.constant 0 : i32
    return %c0_i32, %c0_i32_0 : i32, i32
  }
  func.func @transform_4(%arg0: i32) -> (i32, i32) {
    %c0_i32 = arith.constant 0 : i32
    %c0_i32_0 = arith.constant 0 : i32
    %c0_i32_1 = arith.constant 0 : i32
    return %c0_i32, %c0_i32_0 : i32, i32
  }
  func.func @transform_5(%arg0: i32) -> (i32, i32) {
    %c0_i32 = arith.constant 0 : i32
    %c0_i32_0 = arith.constant 0 : i32
    %c0_i32_1 = arith.constant 0 : i32
    return %c0_i32, %c0_i32_0 : i32, i32
  }
  func.func @transform_6(%arg0: i32) -> (i32, i32) {
    %c0_i32 = arith.constant 0 : i32
    %c0_i32_0 = arith.constant 0 : i32
    %c0_i32_1 = arith.constant 0 : i32
    return %c0_i32, %c0_i32_0 : i32, i32
  }
  func.func @transform_7(%arg0: i32) -> (i32, i32) {
    %c0_i32 = arith.constant 0 : i32
    %c0_i32_0 = arith.constant 0 : i32
    %c0_i32_1 = arith.constant 0 : i32
    return %c0_i32, %c0_i32_0 : i32, i32
  }
  func.func @transform_8(%arg0: i32) -> (i32, i32) {
    %c0_i32 = arith.constant 0 : i32
    %c0_i32_0 = arith.constant 0 : i32
    %c0_i32_1 = arith.constant 0 : i32
    return %c0_i32, %c0_i32_0 : i32, i32
  }
  func.func @transform_9(%arg0: i32) -> (i32, i32) {
    %c0_i32 = arith.constant 0 : i32
    %c0_i32_0 = arith.constant 0 : i32
    %c0_i32_1 = arith.constant 0 : i32
    return %c0_i32, %c0_i32_0 : i32, i32
  }
  func.func @transform_10(%arg0: i32) -> (i32, i32) {
    %c0_i32 = arith.constant 0 : i32
    %c0_i32_0 = arith.constant 0 : i32
    %c0_i32_1 = arith.constant 0 : i32
    return %c0_i32, %c0_i32_0 : i32, i32
  }
  func.func @transform_11(%arg0: i32) -> (i32, i32) {
    %c0_i32 = arith.constant 0 : i32
    %c0_i32_0 = arith.constant 0 : i32
    return %arg0, %c0_i32 : i32, i32
  }
}

</mosaic_0001>

<llo_original>
// kernel: autoencoder_forward.1
$region0: #{autoencoder_forward.1}
  #allocation0 [shape = 'u32[]', space=smem, size = 0x4, offset = 0x4, fixed_abs, tag = 'smem constant byte address 0x4 - core index']
  #allocation1 [shape = 'u32[144,128]{1,0:T(1,128)}', space=vmem, size = 0x12000, scoped, tag = 'internal scratch']
  #allocation2 [shape = 'bf16[16,128]{1,0:T(8,128)(2,1)}', space=vmem, size = 0x1000, scoped, tag = 'scratch operand']
  %s0 = inlined_call_operand.vmem [shape: f32[16,92], index: 0, kind: input, shape index: {}]
  %s1 = inlined_call_operand.vmem [shape: bf16[128,128], index: 1, kind: input, shape index: {}]
  %s2 = inlined_call_operand.vmem [shape: f32[1,128], index: 2, kind: input, shape index: {}]
  %s3 = inlined_call_operand.hbm [shape: bf16[128,128], index: 3, kind: input, shape index: {}]
  %s4 = inlined_call_operand.vmem [shape: f32[1,128], index: 4, kind: input, shape index: {}]
  %s5 = inlined_call_operand.hbm [shape: bf16[128,128], index: 5, kind: input, shape index: {}]
  %s6 = inlined_call_operand.vmem [shape: f32[1,128], index: 6, kind: input, shape index: {}]
  %s7 = inlined_call_operand.hbm [shape: bf16[128,128], index: 7, kind: input, shape index: {}]
  %s8 = inlined_call_operand.vmem [shape: f32[1,128], index: 8, kind: input, shape index: {}]
  %s9 = inlined_call_operand.hbm [shape: bf16[128,128], index: 9, kind: input, shape index: {}]
  %s10 = inlined_call_operand.vmem [shape: f32[1,128], index: 10, kind: input, shape index: {}]
  %s11 = inlined_call_operand.vmem [shape: bf16[16,92], index: 11, kind: output, shape index: {}]
  %s12 = sld [smem:[#allocation0]]
  $region70: #{autoencoder_forward.1} parent=0
    _
  %s14 = ssub.s32 1, %s12
  %s15 = scalar_select 0, %s14, %s12
  $region1: #{autoencoder_forward.1} parent=0
    #allocation3 [shape = 'u8[32768]{0}', space=vmem, size = 0x8000, scoped, tag = 'input window, operand 3, single buffered']
    #allocation4 [shape = 's32[1]{0}', space=sflag, size = 0x4, scoped, tag = 'scoped memory for autoencoder_forward.1']
    #allocation5 [shape = 'u8[32768]{0}', space=vmem, size = 0x8000, scoped, tag = 'input window, operand 5, single buffered']
    #allocation6 [shape = 's32[1]{0}', space=sflag, size = 0x4, scoped, tag = 'scoped memory for autoencoder_forward.1']
    #allocation7 [shape = 'u8[32768]{0}', space=vmem, size = 0x8000, scoped, tag = 'input window, operand 7, single buffered']
    #allocation8 [shape = 'u8[32768]{0}', space=vmem, size = 0x8000, scoped, tag = 'input window, operand 9, single buffered']
    #allocation9 [shape = 's32[1]{0}', space=sflag, size = 0x4, scoped, tag = 'scoped memory for autoencoder_forward.1']
    %16 = vsyncpa [#allocation4], 0
    %17 = vsyncpa [#allocation6], 0
    %18 = vsyncpa [#allocation9], 0
    // Predicated region
    $region2: #{autoencoder_forward.1} parent=1 // pred_check
      _
    $region3: #{autoencoder_forward.1} parent=1 // pred_check_branch
      %20 = sbr.rel (0) target = $region5
    $region4: #{autoencoder_forward.1} parent=1 // pred_region
      _
    $region5: #{autoencoder_forward.1} parent=1 // pred_fallthru
      _
    // Predicated region
    $region6: #{autoencoder_forward.1} parent=1 // pred_check
      _
    $region7: #{autoencoder_forward.1} parent=1 // pred_check_branch
      %22 = sbr.rel (0) target = $region9
    $region8: #{autoencoder_forward.1} parent=1 // pred_region
      _
    $region9: #{autoencoder_forward.1} parent=1 // pred_fallthru
      _
    // Predicated region
    $region10: #{autoencoder_forward.1} parent=1 // pred_check
      _
    $region11: #{autoencoder_forward.1} parent=1 // pred_check_branch
      %24 = sbr.rel (0) target = $region13
    $region12: #{autoencoder_forward.1} parent=1 // pred_region
      _
    $region13: #{autoencoder_forward.1} parent=1 // pred_fallthru
      _
    // Predicated region
    $region14: #{autoencoder_forward.1} parent=1 // pred_check
      _
    $region15: #{autoencoder_forward.1} parent=1 // pred_check_branch
      %26 = sbr.rel (0) target = $region17
    $region16: #{autoencoder_forward.1} parent=1 // pred_region
      %s28 = ssub.s32 1024, 1024
      %29 = vsyncadd [#allocation4], %s28
      %s30 = sshll.u32 [#allocation3], 4
      %s31 = int_to_ptr.vmem [resolvable:$true] %s30
      %36 = dma.hbm_to_vmem [thread:$0]  %s3, 1024, %s31, [#allocation4], 64, 64, 4
    $region17: #{autoencoder_forward.1} parent=1 // pred_fallthru
      _
    // Predicated region
    $region18: #{autoencoder_forward.1} parent=1 // pred_check
      _
    $region19: #{autoencoder_forward.1} parent=1 // pred_check_branch
      %38 = sbr.rel (0) target = $region21
    $region20: #{autoencoder_forward.1} parent=1 // pred_region
      _
    $region21: #{autoencoder_forward.1} parent=1 // pred_fallthru
      _
    // Predicated region
    $region22: #{autoencoder_forward.1} parent=1 // pred_check
      _
    $region23: #{autoencoder_forward.1} parent=1 // pred_check_branch
      %40 = sbr.rel (0) target = $region25
    $region24: #{autoencoder_forward.1} parent=1 // pred_region
      %s42 = ssub.s32 1024, 1024
      %43 = vsyncadd [#allocation6], %s42
      %s44 = sshll.u32 [#allocation5], 4
      %s45 = int_to_ptr.vmem [resolvable:$true] %s44
      %50 = dma.hbm_to_vmem [thread:$0]  %s5, 1024, %s45, [#allocation6], 64, 64, 4
    $region25: #{autoencoder_forward.1} parent=1 // pred_fallthru
      _
    // Predicated region
    $region26: #{autoencoder_forward.1} parent=1 // pred_check
      _
    $region27: #{autoencoder_forward.1} parent=1 // pred_check_branch
      %52 = sbr.rel (0) target = $region29
    $region28: #{autoencoder_forward.1} parent=1 // pred_region
      _
    $region29: #{autoencoder_forward.1} parent=1 // pred_fallthru
      _
    // Predicated region
    $region30: #{autoencoder_forward.1} parent=1 // pred_check
      _
    $region31: #{autoencoder_forward.1} parent=1 // pred_check_branch
      %54 = sbr.rel (0) target = $region33
    $region32: #{autoencoder_forward.1} parent=1 // pred_region
      %s56 = ssub.s32 1024, 1024
      %57 = vsyncadd [#allocation6], %s56
      %s58 = sshll.u32 [#allocation7], 4
      %s59 = int_to_ptr.vmem [resolvable:$true] %s58
      %64 = dma.hbm_to_vmem [thread:$0]  %s7, 1024, %s59, [#allocation6], 64, 64, 4
    $region33: #{autoencoder_forward.1} parent=1 // pred_fallthru
      _
    // Predicated region
    $region34: #{autoencoder_forward.1} parent=1 // pred_check
      _
    $region35: #{autoencoder_forward.1} parent=1 // pred_check_branch
      %66 = sbr.rel (0) target = $region37
    $region36: #{autoencoder_forward.1} parent=1 // pred_region
      _
    $region37: #{autoencoder_forward.1} parent=1 // pred_fallthru
      _
    // Predicated region
    $region38: #{autoencoder_forward.1} parent=1 // pred_check
      _
    $region39: #{autoencoder_forward.1} parent=1 // pred_check_branch
      %68 = sbr.rel (0) target = $region41
    $region40: #{autoencoder_forward.1} parent=1 // pred_region
      %s70 = ssub.s32 1024, 1024
      %71 = vsyncadd [#allocation9], %s70
      %s72 = sshll.u32 [#allocation8], 4
      %s73 = int_to_ptr.vmem [resolvable:$true] %s72
      %78 = dma.hbm_to_vmem [thread:$0]  %s9, 1024, %s73, [#allocation9], 64, 64, 4
    $region41: #{autoencoder_forward.1} parent=1 // pred_fallthru
      _
    // Predicated region
    $region42: #{autoencoder_forward.1} parent=1 // pred_check
      _
    $region43: #{autoencoder_forward.1} parent=1 // pred_check_branch
      %80 = sbr.rel (0) target = $region45
    $region44: #{autoencoder_forward.1} parent=1 // pred_region
      _
    $region45: #{autoencoder_forward.1} parent=1 // pred_fallthru
      _
    // Predicated region
    $region46: #{autoencoder_forward.1} parent=1 // pred_check
      _
    $region47: #{autoencoder_forward.1} parent=1 // pred_check_branch
      %82 = sbr.rel (0) target = $region49
    $region48: #{autoencoder_forward.1} parent=1 // pred_region
      %83 = dma.done [#allocation4], 1024
    $region49: #{autoencoder_forward.1} parent=1 // pred_fallthru
      _
    // Predicated region
    $region50: #{autoencoder_forward.1} parent=1 // pred_check
      _
    $region51: #{autoencoder_forward.1} parent=1 // pred_check_branch
      %85 = sbr.rel (0) target = $region53
    $region52: #{autoencoder_forward.1} parent=1 // pred_region
      %86 = dma.done [#allocation6], 1024
    $region53: #{autoencoder_forward.1} parent=1 // pred_fallthru
      _
    // Predicated region
    $region54: #{autoencoder_forward.1} parent=1 // pred_check
      _
    $region55: #{autoencoder_forward.1} parent=1 // pred_check_branch
      %88 = sbr.rel (0) target = $region57
    $region56: #{autoencoder_forward.1} parent=1 // pred_region
      %89 = dma.done [#allocation6], 1024
    $region57: #{autoencoder_forward.1} parent=1 // pred_fallthru
      _
    // Predicated region
    $region58: #{autoencoder_forward.1} parent=1 // pred_check
      _
    $region59: #{autoencoder_forward.1} parent=1 // pred_check_branch
      %91 = sbr.rel (0) target = $region61
    $region60: #{autoencoder_forward.1} parent=1 // pred_region
      %92 = dma.done [#allocation9], 1024
    $region61: #{autoencoder_forward.1} parent=1 // pred_fallthru
      _
    %94 = vst [vmem:[#allocation2] sm:$0xf] 0
    %95 = vst [vmem:[#allocation2 + $0x4] sm:$0xf] 0
    %v96 = vld [vmem:[%s0] sm:$0xff]
    %v97 = vld [vmem:[%s0 + $0x8] sm:$0xff]
    %v98 = vpack.c.bf16 %v97, %v96
    %v100 = vunpack.c.l.b16 %v98
    %v101 = vunpack.c.h.b16 %v98
    %v102 = vpack.c.b16 %v100, %v100
    %v103 = vpack.c.b16 %v101, %v101
    %vm106 = vcmask 748544
    %107 = vst.msk [vmem:[#allocation2] sm:$0xf] %vm106, %v102
    %108 = vst.msk [vmem:[#allocation2 + $0x4] sm:$0xf] %vm106, %v103
    %v109 = vld [vmem:[#allocation2] sm:$0xf]
    %v110 = vld [vmem:[#allocation2 + $0x4] sm:$0xf]
    %v111 = vld [vmem:[%s1] sm:$0xf]
    %v112 = vld [vmem:[%s1 + $0x4] sm:$0xf]
    %v113 = vld [vmem:[%s1 + $0x8] sm:$0xf]
    %v114 = vld [vmem:[%s1 + $0xc] sm:$0xf]
    %v115 = vld [vmem:[%s1 + $0x10] sm:$0xf]
    %v116 = vld [vmem:[%s1 + $0x14] sm:$0xf]
    %v117 = vld [vmem:[%s1 + $0x18] sm:$0xf]
    %v118 = vld [vmem:[%s1 + $0x1c] sm:$0xf]
    %v119 = vld [vmem:[%s1 + $0x20] sm:$0xf]
    %v120 = vld [vmem:[%s1 + $0x24] sm:$0xf]
    %v121 = vld [vmem:[%s1 + $0x28] sm:$0xf]
    %v122 = vld [vmem:[%s1 + $0x2c] sm:$0xf]
    %v123 = vld [vmem:[%s1 + $0x30] sm:$0xf]
    %v124 = vld [vmem:[%s1 + $0x34] sm:$0xf]
    %v125 = vld [vmem:[%s1 + $0x38] sm:$0xf]
    %v126 = vld [vmem:[%s1 + $0x3c] sm:$0xf]
    %v127 = vld [vmem:[%s2] sm:$0x1]
    %v129 = vlaneseq
    %v130 = vshrl.u32 %v129, 7
    %v131 = vsub.s32 0, %v130
    %v132 = vrot.slane %v127, %v131
    %v136 = vunpack.c.l.b16 %v109
    %v137 = vunpack.c.l.b16 %v110
    %v138 = vpack.c.b16 %v137, %v136
    %v156 = vunpack.c.l.b16 %v111
    %v157 = vunpack.c.l.b16 %v112
    %v158 = vunpack.c.l.b16 %v113
    %v159 = vunpack.c.l.b16 %v114
    %v160 = vunpack.c.l.b16 %v115
    %v161 = vunpack.c.l.b16 %v116
    %v162 = vunpack.c.l.b16 %v117
    %v163 = vunpack.c.l.b16 %v118
    %v164 = vunpack.c.l.b16 %v119
    %v165 = vunpack.c.l.b16 %v120
    %v166 = vunpack.c.l.b16 %v121
    %v167 = vunpack.c.l.b16 %v122
    %v168 = vunpack.c.l.b16 %v123
    %v169 = vunpack.c.l.b16 %v124
    %v170 = vunpack.c.l.b16 %v125
    %v171 = vunpack.c.l.b16 %v126
    %v172 = vpack.c.b16 %v157, %v156
    %v173 = vpack.c.b16 %v159, %v158
    %v174 = vpack.c.b16 %v161, %v160
    %v175 = vpack.c.b16 %v163, %v162
    %v176 = vpack.c.b16 %v165, %v164
    %v177 = vpack.c.b16 %v167, %v166
    %v178 = vpack.c.b16 %v169, %v168
    %v179 = vpack.c.b16 %v171, %v170
    %188 = vmatprep.subr.bf16.mxu0 0
    %189 = vmatpush1.bf16.msra.mxu0 %v179
    %190 = vmatprep.subr.bf16.mxu0 0
    %191 = vmatpush1.bf16.msra.mxu0 %v178
    %192 = vmatprep.subr.bf16.mxu0 0
    %193 = vmatpush1.bf16.msra.mxu0 %v177
    %194 = vmatprep.subr.bf16.mxu0 0
    %195 = vmatpush1.bf16.msra.mxu0 %v176
    %196 = vmatprep.subr.bf16.mxu0 0
    %197 = vmatpush1.bf16.msra.mxu0 %v175
    %198 = vmatprep.subr.bf16.mxu0 0
    %199 = vmatpush1.bf16.msra.mxu0 %v174
    %200 = vmatprep.subr.bf16.mxu0 0
    %201 = vmatpush1.bf16.msra.mxu0 %v173
    %202 = vmatprep.subr.bf16.mxu0 0
    %203 = vmatpush1.bf16.msra.mxu0 %v172
    %204 = vmatprep.subr.bf16.mxu0 0
    %205 = vmatpush2.bf16.msra.mxu0 0
    %206 = vmatprep.subr.bf16.mxu0 0
    %207 = vmatpush2.bf16.msra.mxu0 0
    %208 = vmatprep.subr.bf16.mxu0 0
    %209 = vmatpush2.bf16.msra.mxu0 0
    %210 = vmatprep.subr.bf16.mxu0 0
    %211 = vmatpush2.bf16.msra.mxu0 0
    %212 = vmatprep.subr.bf16.mxu0 0
    %213 = vmatpush2.bf16.msra.mxu0 0
    %214 = vmatprep.subr.bf16.mxu0 0
    %215 = vmatpush2.bf16.msra.mxu0 0
    %216 = vmatprep.subr.bf16.mxu0 0
    %217 = vmatpush2.bf16.msra.mxu0 0
    %218 = vmatprep.subr.bf16.mxu0 0
    %219 = vmatpush2.bf16.msra.mxu0 0
    %220 = vmatprep.mubr.bf16.mxu0 0
    %221 = vmatmul.mubr.bf16.gmra.mxu0 %v138
    %v222 = vpop.f32.mrf.mxu0
    %v223 = vadd.f32 %v132, %v222
    %v224 = vpop.f32.mrf.mxu0
    %v225 = vpop.f32.mrf.mxu0
    %v226 = vadd.f32 %v132, %v225
    %v227 = vpop.f32.mrf.mxu0
    %228 = vdwg.mxu0
    %v229 = vmax.f32 %v223, 0.0
    %v230 = vmax.f32 %v226, 0.0
    %v231 = vpack.c.bf16 %v230, %v229
    %v232 = vld [vmem:[#allocation3] sm:$0xf]
    %v233 = vld [vmem:[#allocation3 + $0x4] sm:$0xf]
    %v234 = vld [vmem:[#allocation3 + $0x8] sm:$0xf]
    %v235 = vld [vmem:[#allocation3 + $0xc] sm:$0xf]
    %v236 = vld [vmem:[#allocation3 + $0x10] sm:$0xf]
    %v237 = vld [vmem:[#allocation3 + $0x14] sm:$0xf]
    %v238 = vld [vmem:[#allocation3 + $0x18] sm:$0xf]
    %v239 = vld [vmem:[#allocation3 + $0x1c] sm:$0xf]
    %v240 = vld [vmem:[#allocation3 + $0x20] sm:$0xf]
    %v241 = vld [vmem:[#allocation3 + $0x24] sm:$0xf]
    %v242 = vld [vmem:[#allocation3 + $0x28] sm:$0xf]
    %v243 = vld [vmem:[#allocation3 + $0x2c] sm:$0xf]
    %v244 = vld [vmem:[#allocation3 + $0x30] sm:$0xf]
    %v245 = vld [vmem:[#allocation3 + $0x34] sm:$0xf]
    %v246 = vld [vmem:[#allocation3 + $0x38] sm:$0xf]
    %v247 = vld [vmem:[#allocation3 + $0x3c] sm:$0xf]
    %v248 = vld [vmem:[%s4] sm:$0x1]
    %v250 = vlaneseq
    %v251 = vshrl.u32 %v250, 7
    %v252 = vsub.s32 0, %v251
    %v253 = vrot.slane %v248, %v252
    %v271 = vunpack.c.l.b16 %v232
    %v272 = vunpack.c.l.b16 %v233
    %v273 = vunpack.c.l.b16 %v234
    %v274 = vunpack.c.l.b16 %v235
    %v275 = vunpack.c.l.b16 %v236
    %v276 = vunpack.c.l.b16 %v237
    %v277 = vunpack.c.l.b16 %v238
    %v278 = vunpack.c.l.b16 %v239
    %v279 = vunpack.c.l.b16 %v240
    %v280 = vunpack.c.l.b16 %v241
    %v281 = vunpack.c.l.b16 %v242
    %v282 = vunpack.c.l.b16 %v243
    %v283 = vunpack.c.l.b16 %v244
    %v284 = vunpack.c.l.b16 %v245
    %v285 = vunpack.c.l.b16 %v246
    %v286 = vunpack.c.l.b16 %v247
    %v287 = vpack.c.b16 %v272, %v271
    %v288 = vpack.c.b16 %v274, %v273
    %v289 = vpack.c.b16 %v276, %v275
    %v290 = vpack.c.b16 %v278, %v277
    %v291 = vpack.c.b16 %v280, %v279
    %v292 = vpack.c.b16 %v282, %v281
    %v293 = vpack.c.b16 %v284, %v283
    %v294 = vpack.c.b16 %v286, %v285
    %303 = vmatprep.subr.bf16.mxu0 0
    %304 = vmatpush1.bf16.msra.mxu0 %v294
    %305 = vmatprep.subr.bf16.mxu0 0
    %306 = vmatpush1.bf16.msra.mxu0 %v293
    %307 = vmatprep.subr.bf16.mxu0 0
    %308 = vmatpush1.bf16.msra.mxu0 %v292
    %309 = vmatprep.subr.bf16.mxu0 0
    %310 = vmatpush1.bf16.msra.mxu0 %v291
    %311 = vmatprep.subr.bf16.mxu0 0
    %312 = vmatpush1.bf16.msra.mxu0 %v290
    %313 = vmatprep.subr.bf16.mxu0 0
    %314 = vmatpush1.bf16.msra.mxu0 %v289
    %315 = vmatprep.subr.bf16.mxu0 0
    %316 = vmatpush1.bf16.msra.mxu0 %v288
    %317 = vmatprep.subr.bf16.mxu0 0
    %318 = vmatpush1.bf16.msra.mxu0 %v287
    %319 = vmatprep.subr.bf16.mxu0 0
    %320 = vmatpush2.bf16.msra.mxu0 0
    %321 = vmatprep.subr.bf16.mxu0 0
    %322 = vmatpush2.bf16.msra.mxu0 0
    %323 = vmatprep.subr.bf16.mxu0 0
    %324 = vmatpush2.bf16.msra.mxu0 0
    %325 = vmatprep.subr.bf16.mxu0 0
    %326 = vmatpush2.bf16.msra.mxu0 0
    %327 = vmatprep.subr.bf16.mxu0 0
    %328 = vmatpush2.bf16.msra.mxu0 0
    %329 = vmatprep.subr.bf16.mxu0 0
    %330 = vmatpush2.bf16.msra.mxu0 0
    %331 = vmatprep.subr.bf16.mxu0 0
    %332 = vmatpush2.bf16.msra.mxu0 0
    %333 = vmatprep.subr.bf16.mxu0 0
    %334 = vmatpush2.bf16.msra.mxu0 0
    %335 = vmatprep.mubr.bf16.mxu0 0
    %336 = vmatmul.mubr.bf16.gmra.mxu0 %v231
    %v337 = vpop.f32.mrf.mxu0
    %v338 = vadd.f32 %v253, %v337
    %v339 = vpop.f32.mrf.mxu0
    %v340 = vpop.f32.mrf.mxu0
    %v341 = vadd.f32 %v253, %v340
    %v342 = vpop.f32.mrf.mxu0
    %343 = vdwg.mxu0
    %v344 = vmax.f32 %v338, 0.0
    %v345 = vmax.f32 %v341, 0.0
    %v346 = vpack.c.bf16 %v345, %v344
    %v347 = vld [vmem:[#allocation5] sm:$0xf]
    %v348 = vld [vmem:[#allocation5 + $0x4] sm:$0xf]
    %v349 = vld [vmem:[#allocation5 + $0x8] sm:$0xf]
    %v350 = vld [vmem:[#allocation5 + $0xc] sm:$0xf]
    %v351 = vld [vmem:[#allocation5 + $0x10] sm:$0xf]
    %v352 = vld [vmem:[#allocation5 + $0x14] sm:$0xf]
    %v353 = vld [vmem:[#allocation5 + $0x18] sm:$0xf]
    %v354 = vld [vmem:[#allocation5 + $0x1c] sm:$0xf]
    %v355 = vld [vmem:[#allocation5 + $0x20] sm:$0xf]
    %v356 = vld [vmem:[#allocation5 + $0x24] sm:$0xf]
    %v357 = vld [vmem:[#allocation5 + $0x28] sm:$0xf]
    %v358 = vld [vmem:[#allocation5 + $0x2c] sm:$0xf]
    %v359 = vld [vmem:[#allocation5 + $0x30] sm:$0xf]
    %v360 = vld [vmem:[#allocation5 + $0x34] sm:$0xf]
    %v361 = vld [vmem:[#allocation5 + $0x38] sm:$0xf]
    %v362 = vld [vmem:[#allocation5 + $0x3c] sm:$0xf]
    %v363 = vld [vmem:[%s6] sm:$0x1]
    %v365 = vlaneseq
    %v366 = vshrl.u32 %v365, 7
    %v367 = vsub.s32 0, %v366
    %v368 = vrot.slane %v363, %v367
    %v386 = vunpack.c.l.b16 %v347
    %v387 = vunpack.c.l.b16 %v348
    %v388 = vunpack.c.l.b16 %v349
    %v389 = vunpack.c.l.b16 %v350
    %v390 = vunpack.c.l.b16 %v351
    %v391 = vunpack.c.l.b16 %v352
    %v392 = vunpack.c.l.b16 %v353
    %v393 = vunpack.c.l.b16 %v354
    %v394 = vunpack.c.l.b16 %v355
    %v395 = vunpack.c.l.b16 %v356
    %v396 = vunpack.c.l.b16 %v357
    %v397 = vunpack.c.l.b16 %v358
    %v398 = vunpack.c.l.b16 %v359
    %v399 = vunpack.c.l.b16 %v360
    %v400 = vunpack.c.l.b16 %v361
    %v401 = vunpack.c.l.b16 %v362
    %v402 = vpack.c.b16 %v387, %v386
    %v403 = vpack.c.b16 %v389, %v388
    %v404 = vpack.c.b16 %v391, %v390
    %v405 = vpack.c.b16 %v393, %v392
    %v406 = vpack.c.b16 %v395, %v394
    %v407 = vpack.c.b16 %v397, %v396
    %v408 = vpack.c.b16 %v399, %v398
    %v409 = vpack.c.b16 %v401, %v400
    %418 = vmatprep.subr.bf16.mxu0 0
    %419 = vmatpush1.bf16.msra.mxu0 %v409
    %420 = vmatprep.subr.bf16.mxu0 0
    %421 = vmatpush1.bf16.msra.mxu0 %v408
    %422 = vmatprep.subr.bf16.mxu0 0
    %423 = vmatpush1.bf16.msra.mxu0 %v407
    %424 = vmatprep.subr.bf16.mxu0 0
    %425 = vmatpush1.bf16.msra.mxu0 %v406
    %426 = vmatprep.subr.bf16.mxu0 0
    %427 = vmatpush1.bf16.msra.mxu0 %v405
    %428 = vmatprep.subr.bf16.mxu0 0
    %429 = vmatpush1.bf16.msra.mxu0 %v404
    %430 = vmatprep.subr.bf16.mxu0 0
    %431 = vmatpush1.bf16.msra.mxu0 %v403
    %432 = vmatprep.subr.bf16.mxu0 0
    %433 = vmatpush1.bf16.msra.mxu0 %v402
    %434 = vmatprep.subr.bf16.mxu0 0
    %435 = vmatpush2.bf16.msra.mxu0 0
    %436 = vmatprep.subr.bf16.mxu0 0
    %437 = vmatpush2.bf16.msra.mxu0 0
    %438 = vmatprep.subr.bf16.mxu0 0
    %439 = vmatpush2.bf16.msra.mxu0 0
    %440 = vmatprep.subr.bf16.mxu0 0
    %441 = vmatpush2.bf16.msra.mxu0 0
    %442 = vmatprep.subr.bf16.mxu0 0
    %443 = vmatpush2.bf16.msra.mxu0 0
    %444 = vmatprep.subr.bf16.mxu0 0
    %445 = vmatpush2.bf16.msra.mxu0 0
    %446 = vmatprep.subr.bf16.mxu0 0
    %447 = vmatpush2.bf16.msra.mxu0 0
    %448 = vmatprep.subr.bf16.mxu0 0
    %449 = vmatpush2.bf16.msra.mxu0 0
    %450 = vmatprep.mubr.bf16.mxu0 0
    %451 = vmatmul.mubr.bf16.gmra.mxu0 %v346
    %v452 = vpop.f32.mrf.mxu0
    %v453 = vadd.f32 %v368, %v452
    %v454 = vpop.f32.mrf.mxu0
    %v455 = vpop.f32.mrf.mxu0
    %v456 = vadd.f32 %v368, %v455
    %v457 = vpop.f32.mrf.mxu0
    %458 = vdwg.mxu0
    %v459 = vmax.f32 %v453, 0.0
    %v460 = vmax.f32 %v456, 0.0
    %v461 = vpack.c.bf16 %v460, %v459
    %v462 = vld [vmem:[#allocation7] sm:$0xf]
    %v463 = vld [vmem:[#allocation7 + $0x4] sm:$0xf]
    %v464 = vld [vmem:[#allocation7 + $0x8] sm:$0xf]
    %v465 = vld [vmem:[#allocation7 + $0xc] sm:$0xf]
    %v466 = vld [vmem:[#allocation7 + $0x10] sm:$0xf]
    %v467 = vld [vmem:[#allocation7 + $0x14] sm:$0xf]
    %v468 = vld [vmem:[#allocation7 + $0x18] sm:$0xf]
    %v469 = vld [vmem:[#allocation7 + $0x1c] sm:$0xf]
    %v470 = vld [vmem:[#allocation7 + $0x20] sm:$0xf]
    %v471 = vld [vmem:[#allocation7 + $0x24] sm:$0xf]
    %v472 = vld [vmem:[#allocation7 + $0x28] sm:$0xf]
    %v473 = vld [vmem:[#allocation7 + $0x2c] sm:$0xf]
    %v474 = vld [vmem:[#allocation7 + $0x30] sm:$0xf]
    %v475 = vld [vmem:[#allocation7 + $0x34] sm:$0xf]
    %v476 = vld [vmem:[#allocation7 + $0x38] sm:$0xf]
    %v477 = vld [vmem:[#allocation7 + $0x3c] sm:$0xf]
    %v478 = vld [vmem:[%s8] sm:$0x1]
    %v480 = vlaneseq
    %v481 = vshrl.u32 %v480, 7
    %v482 = vsub.s32 0, %v481
    %v483 = vrot.slane %v478, %v482
    %v501 = vunpack.c.l.b16 %v462
    %v502 = vunpack.c.l.b16 %v463
    %v503 = vunpack.c.l.b16 %v464
    %v504 = vunpack.c.l.b16 %v465
    %v505 = vunpack.c.l.b16 %v466
    %v506 = vunpack.c.l.b16 %v467
    %v507 = vunpack.c.l.b16 %v468
    %v508 = vunpack.c.l.b16 %v469
    %v509 = vunpack.c.l.b16 %v470
    %v510 = vunpack.c.l.b16 %v471
    %v511 = vunpack.c.l.b16 %v472
    %v512 = vunpack.c.l.b16 %v473
    %v513 = vunpack.c.l.b16 %v474
    %v514 = vunpack.c.l.b16 %v475
    %v515 = vunpack.c.l.b16 %v476
    %v516 = vunpack.c.l.b16 %v477
    %v517 = vpack.c.b16 %v502, %v501
    %v518 = vpack.c.b16 %v504, %v503
    %v519 = vpack.c.b16 %v506, %v505
    %v520 = vpack.c.b16 %v508, %v507
    %v521 = vpack.c.b16 %v510, %v509
    %v522 = vpack.c.b16 %v512, %v511
    %v523 = vpack.c.b16 %v514, %v513
    %v524 = vpack.c.b16 %v516, %v515
    %533 = vmatprep.subr.bf16.mxu0 0
    %534 = vmatpush1.bf16.msra.mxu0 %v524
    %535 = vmatprep.subr.bf16.mxu0 0
    %536 = vmatpush1.bf16.msra.mxu0 %v523
    %537 = vmatprep.subr.bf16.mxu0 0
    %538 = vmatpush1.bf16.msra.mxu0 %v522
    %539 = vmatprep.subr.bf16.mxu0 0
    %540 = vmatpush1.bf16.msra.mxu0 %v521
    %541 = vmatprep.subr.bf16.mxu0 0
    %542 = vmatpush1.bf16.msra.mxu0 %v520
    %543 = vmatprep.subr.bf16.mxu0 0
    %544 = vmatpush1.bf16.msra.mxu0 %v519
    %545 = vmatprep.subr.bf16.mxu0 0
    %546 = vmatpush1.bf16.msra.mxu0 %v518
    %547 = vmatprep.subr.bf16.mxu0 0
    %548 = vmatpush1.bf16.msra.mxu0 %v517
    %549 = vmatprep.subr.bf16.mxu0 0
    %550 = vmatpush2.bf16.msra.mxu0 0
    %551 = vmatprep.subr.bf16.mxu0 0
    %552 = vmatpush2.bf16.msra.mxu0 0
    %553 = vmatprep.subr.bf16.mxu0 0
    %554 = vmatpush2.bf16.msra.mxu0 0
    %555 = vmatprep.subr.bf16.mxu0 0
    %556 = vmatpush2.bf16.msra.mxu0 0
    %557 = vmatprep.subr.bf16.mxu0 0
    %558 = vmatpush2.bf16.msra.mxu0 0
    %559 = vmatprep.subr.bf16.mxu0 0
    %560 = vmatpush2.bf16.msra.mxu0 0
    %561 = vmatprep.subr.bf16.mxu0 0
    %562 = vmatpush2.bf16.msra.mxu0 0
    %563 = vmatprep.subr.bf16.mxu0 0
    %564 = vmatpush2.bf16.msra.mxu0 0
    %565 = vmatprep.mubr.bf16.mxu0 0
    %566 = vmatmul.mubr.bf16.gmra.mxu0 %v461
    %v567 = vpop.f32.mrf.mxu0
    %v568 = vadd.f32 %v483, %v567
    %v569 = vpop.f32.mrf.mxu0
    %v570 = vpop.f32.mrf.mxu0
    %v571 = vadd.f32 %v483, %v570
    %v572 = vpop.f32.mrf.mxu0
    %573 = vdwg.mxu0
    %v574 = vmax.f32 %v568, 0.0
    %v575 = vmax.f32 %v571, 0.0
    %v576 = vpack.c.bf16 %v575, %v574
    %v577 = vld [vmem:[#allocation8] sm:$0xf]
    %v578 = vld [vmem:[#allocation8 + $0x4] sm:$0xf]
    %v579 = vld [vmem:[#allocation8 + $0x8] sm:$0xf]
    %v580 = vld [vmem:[#allocation8 + $0xc] sm:$0xf]
    %v581 = vld [vmem:[#allocation8 + $0x10] sm:$0xf]
    %v582 = vld [vmem:[#allocation8 + $0x14] sm:$0xf]
    %v583 = vld [vmem:[#allocation8 + $0x18] sm:$0xf]
    %v584 = vld [vmem:[#allocation8 + $0x1c] sm:$0xf]
    %v585 = vld [vmem:[#allocation8 + $0x20] sm:$0xf]
    %v586 = vld [vmem:[#allocation8 + $0x24] sm:$0xf]
    %v587 = vld [vmem:[#allocation8 + $0x28] sm:$0xf]
    %v588 = vld [vmem:[#allocation8 + $0x2c] sm:$0xf]
    %v589 = vld [vmem:[#allocation8 + $0x30] sm:$0xf]
    %v590 = vld [vmem:[#allocation8 + $0x34] sm:$0xf]
    %v591 = vld [vmem:[#allocation8 + $0x38] sm:$0xf]
    %v592 = vld [vmem:[#allocation8 + $0x3c] sm:$0xf]
    %v593 = vld [vmem:[%s10] sm:$0x1]
    %v595 = vlaneseq
    %v596 = vshrl.u32 %v595, 7
    %v597 = vsub.s32 0, %v596
    %v598 = vrot.slane %v593, %v597
    %v616 = vunpack.c.l.b16 %v577
    %v617 = vunpack.c.l.b16 %v578
    %v618 = vunpack.c.l.b16 %v579
    %v619 = vunpack.c.l.b16 %v580
    %v620 = vunpack.c.l.b16 %v581
    %v621 = vunpack.c.l.b16 %v582
    %v622 = vunpack.c.l.b16 %v583
    %v623 = vunpack.c.l.b16 %v584
    %v624 = vunpack.c.l.b16 %v585
    %v625 = vunpack.c.l.b16 %v586
    %v626 = vunpack.c.l.b16 %v587
    %v627 = vunpack.c.l.b16 %v588
    %v628 = vunpack.c.l.b16 %v589
    %v629 = vunpack.c.l.b16 %v590
    %v630 = vunpack.c.l.b16 %v591
    %v631 = vunpack.c.l.b16 %v592
    %v632 = vpack.c.b16 %v617, %v616
    %v633 = vpack.c.b16 %v619, %v618
    %v634 = vpack.c.b16 %v621, %v620
    %v635 = vpack.c.b16 %v623, %v622
    %v636 = vpack.c.b16 %v625, %v624
    %v637 = vpack.c.b16 %v627, %v626
    %v638 = vpack.c.b16 %v629, %v628
    %v639 = vpack.c.b16 %v631, %v630
    %648 = vmatprep.subr.bf16.mxu0 0
    %649 = vmatpush1.bf16.msra.mxu0 %v639
    %650 = vmatprep.subr.bf16.mxu0 0
    %651 = vmatpush1.bf16.msra.mxu0 %v638
    %652 = vmatprep.subr.bf16.mxu0 0
    %653 = vmatpush1.bf16.msra.mxu0 %v637
    %654 = vmatprep.subr.bf16.mxu0 0
    %655 = vmatpush1.bf16.msra.mxu0 %v636
    %656 = vmatprep.subr.bf16.mxu0 0
    %657 = vmatpush1.bf16.msra.mxu0 %v635
    %658 = vmatprep.subr.bf16.mxu0 0
    %659 = vmatpush1.bf16.msra.mxu0 %v634
    %660 = vmatprep.subr.bf16.mxu0 0
    %661 = vmatpush1.bf16.msra.mxu0 %v633
    %662 = vmatprep.subr.bf16.mxu0 0
    %663 = vmatpush1.bf16.msra.mxu0 %v632
    %664 = vmatprep.subr.bf16.mxu0 0
    %665 = vmatpush2.bf16.msra.mxu0 0
    %666 = vmatprep.subr.bf16.mxu0 0
    %667 = vmatpush2.bf16.msra.mxu0 0
    %668 = vmatprep.subr.bf16.mxu0 0
    %669 = vmatpush2.bf16.msra.mxu0 0
    %670 = vmatprep.subr.bf16.mxu0 0
    %671 = vmatpush2.bf16.msra.mxu0 0
    %672 = vmatprep.subr.bf16.mxu0 0
    %673 = vmatpush2.bf16.msra.mxu0 0
    %674 = vmatprep.subr.bf16.mxu0 0
    %675 = vmatpush2.bf16.msra.mxu0 0
    %676 = vmatprep.subr.bf16.mxu0 0
    %677 = vmatpush2.bf16.msra.mxu0 0
    %678 = vmatprep.subr.bf16.mxu0 0
    %679 = vmatpush2.bf16.msra.mxu0 0
    %680 = vmatprep.mubr.bf16.mxu0 0
    %681 = vmatmul.mubr.bf16.gmra.mxu0 %v576
    %v682 = vpop.f32.mrf.mxu0
    %v683 = vadd.f32 %v598, %v682
    %v684 = vpop.f32.mrf.mxu0
    %v685 = vpop.f32.mrf.mxu0
    %v686 = vadd.f32 %v598, %v685
    %v687 = vpop.f32.mrf.mxu0
    %688 = vdwg.mxu0
    %v689 = vsub.f32 0.0, %v683
    %v690 = vsub.f32 0.0, %v686
    %v691 = vmul.f32 %v689, 1.442695
    %v692 = vpow.pop %v691
    %v693 = vmul.f32 %v690, 1.442695
    %v694 = vpow.pop %v693
    %v695 = vadd.f32 %v692, 1.0
    %v696 = vadd.f32 %v694, 1.0
    %v697 = vrcp.pop %v695
    %v698 = vmul.f32 1.0, %v697
    %v699 = vrcp.pop %v696
    %v700 = vmul.f32 1.0, %v699
    %v701 = vpack.c.bf16 %v700, %v698
    %v703 = vunpack.c.l.b16 %v701
    %v704 = vunpack.c.h.b16 %v701
    %v705 = vpack.c.b16 %v703, %v703
    %v706 = vpack.c.b16 %v704, %v704
    %709 = vst.msk [vmem:[%s11] sm:$0xf] %vm106, %v705
    %710 = vst.msk [vmem:[%s11 + $0x4] sm:$0xf] %vm106, %v706
    // Predicated region
    $region62: #{autoencoder_forward.1} parent=1 // pred_check
      _
    $region63: #{autoencoder_forward.1} parent=1 // pred_check_branch
      %712 = sbr.rel (0) target = $region65
    $region64: #{autoencoder_forward.1} parent=1 // pred_region
      _
    $region65: #{autoencoder_forward.1} parent=1 // pred_fallthru
      _
    // Predicated region
    $region66: #{autoencoder_forward.1} parent=1 // pred_check
      _
    $region67: #{autoencoder_forward.1} parent=1 // pred_check_branch
      %714 = sbr.rel (0) target = $region69
    $region68: #{autoencoder_forward.1} parent=1 // pred_region
      _
    $region69: #{autoencoder_forward.1} parent=1 // pred_fallthru
      _
    %715 = vsyncpa [#allocation4], 1
    %716 = vsyncpa [#allocation6], 1
    %717 = vsyncpa [#allocation9], 1

</llo_original>
